<compile_context>
chip_gen: v7x
topology: tpu7x:2x2x1
jax: 0.10.0
libtpu: 0.0.40
codegen_flags: <defaults>
</compile_context>

<pallas_src>
import functools
import math

import jax
import jax.numpy as jnp
from jax import lax
from jax.experimental import pallas as pl
from jax.experimental.pallas import tpu as pltpu


# --------------------------------------------------------------------------------------
# Kernel 1: LayerNorm + fused QKV projection over flattened (S*B) rows.
# --------------------------------------------------------------------------------------
def _ln_qkv_kernel(x_ref, gamma_ref, beta_ref, w_ref, b_ref,
                   q_ref, k_ref, v_ref, *, compute_dtype):
    D = x_ref.shape[-1]

    # LayerNorm (stats in f32, biased variance, eps=1e-5, like nn.LayerNorm).
    x = x_ref[...].astype(jnp.float32)
    mean = jnp.mean(x, axis=-1, keepdims=True)
    var = jnp.mean(jnp.square(x - mean), axis=-1, keepdims=True)
    xn = (x - mean) * lax.rsqrt(var + 1e-5)
    xn = xn * gamma_ref[...].astype(jnp.float32) + beta_ref[...].astype(jnp.float32)
    xn = xn.astype(compute_dtype)

    # Fused QKV projection.  w_ref is (D, 3D) (pre-transposed, q-scaled) so this is a
    # plain (tm, D) x (D, 3D) contraction — no in-kernel weight transpose/relayout.
    qkv = jnp.dot(xn, w_ref[...], preferred_element_type=jnp.float32)
    qkv = qkv + b_ref[...].astype(jnp.float32)

    q_ref[...] = qkv[:, :D].astype(q_ref.dtype)
    k_ref[...] = qkv[:, D:2 * D].astype(k_ref.dtype)
    v_ref[...] = qkv[:, 2 * D:].astype(v_ref.dtype)


# --------------------------------------------------------------------------------------
# Kernel 2: flash attention (online softmax over KV blocks) + fused output projection.
# --------------------------------------------------------------------------------------
def _flash_attn_kernel(q_ref, k_ref, v_ref, w_out_ref, b_out_ref, o_ref,
                       m_sc, l_sc, acc_sc, *, num_heads):
    tq, bb, D = q_ref.shape
    tk = k_ref.shape[0]
    H = num_heads
    hd = D // H
    G = bb * H
    ki = pl.program_id(2)
    cdtype = q_ref.dtype

    @pl.when(ki == 0)
    def _():
        m_sc[...] = jnp.full((G, tq, 1), -jnp.inf, jnp.float32)
        l_sc[...] = jnp.zeros((G, tq, 1), jnp.float32)
        acc_sc[...] = jnp.zeros((G, tq, hd), jnp.float32)

    # Single retile per tensor: (t, bb, D) -> (G, t, hd) with g = b*H + h (PyTorch head
    # split).  q already carries the 1/sqrt(hd) scale (folded into in_proj weights).
    q = jnp.swapaxes(q_ref[...].reshape(tq, G, hd), 0, 1)     # (G, tq, hd)
    k = jnp.swapaxes(k_ref[...].reshape(tk, G, hd), 0, 1)     # (G, tk, hd)
    v = jnp.swapaxes(v_ref[...].reshape(tk, G, hd), 0, 1)     # (G, tk, hd)

    # One KV block of scores only: (G, tq, tk) — never the full (G, S, S).
    s = jnp.einsum('gqd,gkd->gqk', q, k, preferred_element_type=jnp.float32)

    m_prev = m_sc[...]
    m_new = jnp.maximum(m_prev, jnp.max(s, axis=-1, keepdims=True))
    alpha = jnp.exp(m_prev - m_new)
    p = jnp.exp(s - m_new)                                    # un-normalized probabilities
    l_sc[...] = alpha * l_sc[...] + jnp.sum(p, axis=-1, keepdims=True)
    acc_sc[...] = alpha * acc_sc[...] + jnp.einsum(
        'gqk,gkd->gqd', p.astype(cdtype), v, preferred_element_type=jnp.float32)
    m_sc[...] = m_new

    @pl.when(ki == pl.num_programs(2) - 1)
    def _():
        # Normalize AFTER the PV matmul: G*tq*hd multiplies instead of G*tq*tk.
        ctx = acc_sc[...] * pl.reciprocal(l_sc[...], approx=True)   # (G, tq, hd)
        # (G, tq, hd) -> (tq*bb, D) rows ordered (q, b), columns (head, head_dim).
        ctx = jnp.swapaxes(ctx, 0, 1).reshape(tq * bb, D).astype(cdtype)
        # Output projection: w_out_ref is pre-transposed (D, D) -> plain (M,K)x(K,N).
        y = jnp.dot(ctx, w_out_ref[...], preferred_element_type=jnp.float32)
        y = y + b_out_ref[...].astype(jnp.float32)
        # Lane-dense store: (tq, bb*D) slab.
        o_ref[...] = y.reshape(tq, bb * D).astype(o_ref.dtype)


# --------------------------------------------------------------------------------------
# Generation-aware sizing helpers.
# --------------------------------------------------------------------------------------
def _divisors(n):
    return [d for d in range(1, n + 1) if n % d == 0]


def _vmem_budget_and_cores():
    """Scoped-VMEM limit with headroom (128 MiB -> 112, 64 MiB -> 56) and a megacore hint."""
    try:
        cap = int(pltpu.get_tpu_info().vmem_capacity_bytes)
        if cap <= 0:
            raise ValueError
    except Exception:
        cap = 64 * 1024 * 1024            # conservative default (v7x per-TC physical)
    limit = min(cap - cap // 8, 112 * 1024 * 1024)
    multi_core = False
    try:
        multi_core = "v7" in jax.devices()[0].device_kind.lower()
    except Exception:
        pass
    return limit, multi_core


def _pick_row_block(M, D, itemsize, budget):
    """Largest legal row tile for the LN+QKV kernel that fits the VMEM budget."""
    best = None
    for tm in _divisors(M):
        if not (tm % 8 == 0 or tm == M):
            continue
        io_blocks = 2 * 4 * tm * D * itemsize            # x + q/k/v tiles, double-buffered
        live_f32 = tm * D * 4 + tm * 3 * D * 4           # LN temp + f32 qkv accumulator
        resident = 3 * D * D * itemsize + 5 * D * 4      # weights + biases + gamma/beta
        if io_blocks + live_f32 + resident <= budget and (best is None or tm > best):
            best = tm
    if best is None:
        best = min(d for d in _divisors(M) if d % 8 == 0 or d == M)
    return best


def _pick_attn_blocks(S, B, D, H, itemsize, budget, multi_core):
    """Pick (batch block, q block, kv block). bb == B or bb*D % 128 == 0 (lane-dense out)."""
    hd = D // H
    bb_cands = [d for d in _divisors(B) if d == B or (d * D) % 128 == 0]
    t_cands = [d for d in _divisors(S) if d % 8 == 0 or d == S]

    def fits(bb, tq, tk):
        G = bb * H
        io = 2 * itemsize * bb * D * (2 * tq + 2 * tk)        # q/k/v/out tiles, double-buffered
        scratch = 4 * G * tq * (hd + 2)                       # acc + m + l (f32)
        live = 2 * 4 * G * tq * tk                            # s and p f32 score tiles
        live += itemsize * G * (tq + 2 * tk) * hd             # retiled q/k/v
        resident = itemsize * D * D + 4 * D                   # w_out + b_out
        return io + scratch + live + resident <= budget

    best, best_key = None, None
    for bb in bb_cands:
        for tq in t_cands:
            for tk in t_cands:
                if not fits(bb, tq, tk):
                    continue
                par_steps = (B // bb) * (S // tq)
                # v7x (2 TCs): prefer >=2 parallel grid steps; v5e/v6e: largest tiles.
                pref = 1 if (multi_core and par_steps >= 2) else 0
                key = (pref, bb * tq, tk)
                if best_key is None or key > best_key:
                    best_key, best = key, (bb, tq, tk)
    if best is None:
        best = (min(bb_cands), min(t_cands), min(t_cands))
    return best


# --------------------------------------------------------------------------------------
# Parameter preparation (done ONCE, outside the per-step path).
# --------------------------------------------------------------------------------------
def prepare_params(gamma, beta, w_in, b_in, w_out, b_out, *, num_heads,
                   compute_dtype=None):
    """Pre-transpose weights to (K, N), fold 1/sqrt(head_dim) into the q rows, and
    optionally cast MXU operands to bf16 (opt-in; accumulation stays f32)."""
    D = w_out.shape[0]
    hd = D // num_heads
    scale = 1.0 / math.sqrt(hd)
    cdtype = compute_dtype if compute_dtype is not None else w_in.dtype

    w_in_t = jnp.transpose(w_in)                        # (D, 3D)
    w_in_t = w_in_t.at[:, :D].multiply(scale)           # fold q scale into weights
    b_in_s = b_in.at[:, :D].multiply(scale)             # ... and into the q bias
    w_out_t = jnp.transpose(w_out)                      # (D, D)

    return (gamma, beta,
            w_in_t.astype(cdtype), b_in_s.astype(jnp.float32),
            w_out_t.astype(cdtype), b_out.astype(jnp.float32))


# --------------------------------------------------------------------------------------
# Wrapper.
# --------------------------------------------------------------------------------------
def multi_head_attention(x_sbd, params, *, num_heads,
                         batch_block=None, block_q=None, block_k=None):
    """x_sbd: (S, B, D) seq-first (nn.MultiheadaAttention default layout).
    params: output of prepare_params(...)."""
    S, B, D = x_sbd.shape
    H = num_heads
    assert D % H == 0
    hd = D // H
    gamma, beta, w_in_t, b_in, w_out_t, b_out = params
    cdtype = w_in_t.dtype
    itemsize = jnp.dtype(cdtype).itemsize
    out_dtype = x_sbd.dtype

    vmem_limit, multi_core = _vmem_budget_and_cores()
    budget = (vmem_limit * 3) // 4        # leave slack for Mosaic-internal scratch

    # ---------------- Phase 1: LayerNorm + fused QKV projection ----------------
    M = S * B
    x2 = x_sbd.reshape(M, D)              # free contiguous reshape
    tm = _pick_row_block(M, D, itemsize, budget)
    q2, k2, v2 = pl.pallas_call(
        functools.partial(_ln_qkv_kernel, compute_dtype=cdtype),
        out_shape=tuple(jax.ShapeDtypeStruct((M, D), cdtype) for _ in range(3)),
        grid=(M // tm,),
        in_specs=[
            pl.BlockSpec((tm, D), lambda i: (i, 0)),           # x rows
            pl.BlockSpec((1, D), lambda i: (0, 0)),            # ln gamma
            pl.BlockSpec((1, D), lambda i: (0, 0)),            # ln beta
            pl.BlockSpec((D, 3 * D), lambda i: (0, 0)),        # in_proj weight (pre-T, q-scaled)
            pl.BlockSpec((1, 3 * D), lambda i: (0, 0)),        # in_proj bias (q-scaled, f32)
        ],
        out_specs=tuple(pl.BlockSpec((tm, D), lambda i: (i, 0)) for _ in range(3)),
        compiler_params=pltpu.CompilerParams(
            dimension_semantics=("parallel",),
            vmem_limit_bytes=vmem_limit),
    )(x2, gamma, beta, w_in_t, b_in)

    q3 = q2.reshape(S, B, D)
    k3 = k2.reshape(S, B, D)
    v3 = v2.reshape(S, B, D)

    # ---------------- Phase 2: flash attention + output projection --------------
    bb, tq, tk = _pick_attn_blocks(S, B, D, H, itemsize, budget, multi_core)
    if batch_block is not None:
        bb = batch_block
    if block_q is not None:
        tq = block_q
    if block_k is not None:
        tk = block_k
    assert B % bb == 0 and S % tq == 0 and S % tk == 0
    nb, nq, nk = B // bb, S // tq, S // tk

    out_slab = pl.pallas_call(
        functools.partial(_flash_attn_kernel, num_heads=H),
        out_shape=jax.ShapeDtypeStruct((S, B * D), out_dtype),
        grid=(nb, nq, nk),
        in_specs=[
            pl.BlockSpec((tq, bb, D), lambda b, qi, ki: (qi, b, 0)),   # q block
            pl.BlockSpec((tk, bb, D), lambda b, qi, ki: (ki, b, 0)),   # k block
            pl.BlockSpec((tk, bb, D), lambda b, qi, ki: (ki, b, 0)),   # v block
            pl.BlockSpec((D, D), lambda b, qi, ki: (0, 0)),            # out_proj weight (pre-T)
            pl.BlockSpec((1, D), lambda b, qi, ki: (0, 0)),            # out_proj bias (f32)
        ],
        out_specs=pl.BlockSpec((tq, bb * D), lambda b, qi, ki: (qi, b)),
        scratch_shapes=[
            pltpu.VMEM((bb * H, tq, 1), jnp.float32),    # running max m
            pltpu.VMEM((bb * H, tq, 1), jnp.float32),    # running denom l
            pltpu.VMEM((bb * H, tq, hd), jnp.float32),   # un-normalized context acc
        ],
        compiler_params=pltpu.CompilerParams(
            dimension_semantics=("parallel", "parallel", "arbitrary"),
            vmem_limit_bytes=vmem_limit),
    )(q3, k3, v3, w_out_t, b_out)

    # (S, B*D) -> (S, B, D) is a free contiguous reshape.
    return out_slab.reshape(S, B, D)


# --------------------------------------------------------------------------------------
# Pure-JAX reference (PyTorch eval-mode semantics) and test.
# --------------------------------------------------------------------------------------
def _reference(x_sbd, raw_params, *, num_heads):
    gamma, beta, w_in, b_in, w_out, b_out = raw_params
    S, B, D = x_sbd.shape
    hd = D // num_heads
    x = x_sbd.astype(jnp.float32)
    mean = jnp.mean(x, axis=-1, keepdims=True)
    var = jnp.mean((x - mean) ** 2, axis=-1, keepdims=True)
    xn = (x - mean) * jax.lax.rsqrt(var + 1e-5) * gamma[0] + beta[0]
    qkv = jnp.einsum("sbd,ed->sbe", xn, w_in) + b_in[0]
    q, k, v = qkv[..., :D], qkv[..., D:2 * D], qkv[..., 2 * D:]

    def split(t):  # (S,B,D) -> (B,H,S,hd)
        return jnp.transpose(t.reshape(S, B, num_heads, hd), (1, 2, 0, 3))

    qh, kh, vh = split(q), split(k), split(v)
    s = jnp.einsum("bhqd,bhkd->bhqk", qh * (1.0 / math.sqrt(hd)), kh)
    p = jax.nn.softmax(s, axis=-1)
    o = jnp.einsum("bhqk,bhkd->bhqd", p, vh)
    o = jnp.transpose(o, (2, 0, 1, 3)).reshape(S, B, D)
    return jnp.einsum("sbd,ed->sbe", o, w_out) + b_out[0]


if __name__ == "__main__":
    config = {"dim": 32, "heads": 4, "dropout": 0.0}
    S, B, D, H = 8, 2, config["dim"], config["heads"]

    key = jax.random.PRNGKey(0)
    kx, kwin, kbin, kwout, kbout = jax.random.split(key, 5)

    x = jax.random.normal(kx, (S, B, D), dtype=jnp.float32)

    # Parameters, shapes follow nn.MultiheadAttention / nn.LayerNorm; 1-D params are
    # stored as (1, N) for TPU tiling.
    gamma = jnp.ones((1, D), jnp.float32)
    beta = jnp.zeros((1, D), jnp.float32)
    w_in = jax.random.normal(kwin, (3 * D, D), jnp.float32) * (1.0 / math.sqrt(D))
    b_in = jax.random.normal(kbin, (1, 3 * D), jnp.float32) * 0.02
    w_out = jax.random.normal(kwout, (D, D), jnp.float32) * (1.0 / math.sqrt(D))
    b_out = jax.random.normal(kbout, (1, D), jnp.float32) * 0.02
    raw = (gamma, beta, w_in, b_in, w_out, b_out)

    ref = _reference(x, raw, num_heads=H)

    # Default (f32-compute) path.
    params = prepare_params(*raw, num_heads=H)
    out = jax.block_until_ready(multi_head_attention(x, params, num_heads=H))
    assert out.shape == (S, B, D)
    assert jnp.allclose(out, ref, atol=5e-3, rtol=5e-3), "mismatch vs reference (f32)"

    # Longer sequence with forced q/kv tiling exercises the multi-block online softmax.
    S2 = 16
    x_long = jax.random.normal(jax.random.PRNGKey(1), (S2, B, D), dtype=jnp.float32)
    ref_long = _reference(x_long, raw, num_heads=H)
    out_long = jax.block_until_ready(multi_head_attention(
        x_long, params, num_heads=H, block_q=8, block_k=8))
    assert jnp.allclose(out_long, ref_long, atol=5e-3, rtol=5e-3), \
        "mismatch vs reference (flash tiling)"

    # Opt-in bf16 MXU path (f32 accumulation) — looser tolerance.
    params_bf16 = prepare_params(*raw, num_heads=H, compute_dtype=jnp.bfloat16)
    out_bf16 = jax.block_until_ready(multi_head_attention(x, params_bf16, num_heads=H))
    assert jnp.allclose(out_bf16, ref, atol=1e-1, rtol=1e-1), "mismatch vs reference (bf16)"

    print("KERNEL_OK")
</pallas_src>

<mosaic_0001>
module attributes {stable_mosaic.version = 11 : i64} {
  func.func @_ln_qkv_kernel(%arg0: i32, %arg1: memref<16x32xf32, #tpu.memory_space<vmem>>, %arg2: memref<1x32xf32, #tpu.memory_space<vmem>>, %arg3: memref<1x32xf32, #tpu.memory_space<vmem>>, %arg4: memref<32x96xf32, #tpu.memory_space<vmem>>, %arg5: memref<1x96xf32, #tpu.memory_space<vmem>>, %arg6: memref<16x32xf32, #tpu.memory_space<vmem>>, %arg7: memref<16x32xf32, #tpu.memory_space<vmem>>, %arg8: memref<16x32xf32, #tpu.memory_space<vmem>>) attributes {dimension_semantics = [#tpu.dimension_semantics<parallel>], iteration_bounds = array<i64: 1>, scalar_prefetch = 0 : i64, scratch_operands = 0 : i64, tpu.core_type = #tpu.core_type<tc>, window_params = [{transform_indices = @transform_0, window_bounds = array<i64: 16, 32>}, {pipeline_mode = #tpu.pipeline_mode<synchronous>, transform_indices = @transform_1, window_bounds = array<i64: 1, 32>}, {pipeline_mode = #tpu.pipeline_mode<synchronous>, transform_indices = @transform_2, window_bounds = array<i64: 1, 32>}, {pipeline_mode = #tpu.pipeline_mode<synchronous>, transform_indices = @transform_3, window_bounds = array<i64: 32, 96>}, {pipeline_mode = #tpu.pipeline_mode<synchronous>, transform_indices = @transform_4, window_bounds = array<i64: 1, 96>}, {transform_indices = @transform_5, window_bounds = array<i64: 16, 32>}, {transform_indices = @transform_6, window_bounds = array<i64: 16, 32>}, {transform_indices = @transform_7, window_bounds = array<i64: 16, 32>}]} {
    %c0 = arith.constant 0 : index
    %c0_0 = arith.constant 0 : index
    %0 = vector.load %arg1[%c0, %c0_0] : memref<16x32xf32, #tpu.memory_space<vmem>>, vector<16x32xf32>
    %cst = arith.constant dense<0.000000e+00> : vector<16xf32>
    %1 = vector.multi_reduction <add>, %0, %cst [1] : vector<16x32xf32> to vector<16xf32>
    %2 = vector.shape_cast %1 : vector<16xf32> to vector<16x1xf32>
    %cst_1 = arith.constant 3.200000e+01 : f32
    %3 = vector.broadcast %cst_1 : f32 to vector<16x1xf32>
    %4 = arith.divf %2, %3 : vector<16x1xf32>
    %5 = vector.broadcast %4 : vector<16x1xf32> to vector<16x32xf32>
    %6 = arith.subf %0, %5 : vector<16x32xf32>
    %7 = arith.mulf %6, %6 : vector<16x32xf32>
    %cst_2 = arith.constant dense<0.000000e+00> : vector<16xf32>
    %8 = vector.multi_reduction <add>, %7, %cst_2 [1] : vector<16x32xf32> to vector<16xf32>
    %9 = vector.shape_cast %8 : vector<16xf32> to vector<16x1xf32>
    %cst_3 = arith.constant 3.200000e+01 : f32
    %10 = vector.broadcast %cst_3 : f32 to vector<16x1xf32>
    %11 = arith.divf %9, %10 : vector<16x1xf32>
    %12 = vector.broadcast %4 : vector<16x1xf32> to vector<16x32xf32>
    %13 = arith.subf %0, %12 : vector<16x32xf32>
    %cst_4 = arith.constant 9.99999974E-6 : f32
    %14 = vector.broadcast %cst_4 : f32 to vector<16x1xf32>
    %15 = arith.addf %11, %14 : vector<16x1xf32>
    %16 = math.rsqrt %15 : vector<16x1xf32>
    %17 = vector.broadcast %16 : vector<16x1xf32> to vector<16x32xf32>
    %18 = arith.mulf %13, %17 : vector<16x32xf32>
    %c0_5 = arith.constant 0 : index
    %c0_6 = arith.constant 0 : index
    %19 = vector.load %arg2[%c0_5, %c0_6] : memref<1x32xf32, #tpu.memory_space<vmem>>, vector<1x32xf32>
    %20 = vector.broadcast %19 : vector<1x32xf32> to vector<16x32xf32>
    %21 = arith.mulf %18, %20 : vector<16x32xf32>
    %c0_7 = arith.constant 0 : index
    %c0_8 = arith.constant 0 : index
    %22 = vector.load %arg3[%c0_7, %c0_8] : memref<1x32xf32, #tpu.memory_space<vmem>>, vector<1x32xf32>
    %23 = vector.broadcast %22 : vector<1x32xf32> to vector<16x32xf32>
    %24 = arith.addf %21, %23 : vector<16x32xf32>
    %c0_9 = arith.constant 0 : index
    %c0_10 = arith.constant 0 : index
    %25 = vector.load %arg4[%c0_9, %c0_10] : memref<32x96xf32, #tpu.memory_space<vmem>>, vector<32x96xf32>
    %cst_11 = arith.constant dense<0.000000e+00> : vector<16x96xf32>
    %26 = tpu.matmul %24, %25, %cst_11 {dimension_numbers = #tpu.dot_dimension_numbers<[1], [0], [0], [1], [0, 0, 1, 1], [], []>} : vector<16x32xf32>, vector<32x96xf32>, vector<16x96xf32> -> vector<16x96xf32>
    %c0_12 = arith.constant 0 : index
    %c0_13 = arith.constant 0 : index
    %27 = vector.load %arg5[%c0_12, %c0_13] : memref<1x96xf32, #tpu.memory_space<vmem>>, vector<1x96xf32>
    %28 = vector.broadcast %27 : vector<1x96xf32> to vector<16x96xf32>
    %29 = arith.addf %26, %28 : vector<16x96xf32>
    %30 = vector.extract_strided_slice %29 {offsets = [0, 0], sizes = [16, 32], strides = [1, 1]} : vector<16x96xf32> to vector<16x32xf32>
    %c0_14 = arith.constant 0 : index
    %c0_15 = arith.constant 0 : index
    %31 = vector.load %arg6[%c0_14, %c0_15] : memref<16x32xf32, #tpu.memory_space<vmem>>, vector<16x32xf32>
    tpu.vector_store %arg6[%c0_14, %c0_15], %30 {strides = array<i32>} : memref<16x32xf32, #tpu.memory_space<vmem>>, vector<16x32xf32>,
    %32 = vector.extract_strided_slice %29 {offsets = [0, 32], sizes = [16, 32], strides = [1, 1]} : vector<16x96xf32> to vector<16x32xf32>
    %c0_16 = arith.constant 0 : index
    %c0_17 = arith.constant 0 : index
    %33 = vector.load %arg7[%c0_16, %c0_17] : memref<16x32xf32, #tpu.memory_space<vmem>>, vector<16x32xf32>
    tpu.vector_store %arg7[%c0_16, %c0_17], %32 {strides = array<i32>} : memref<16x32xf32, #tpu.memory_space<vmem>>, vector<16x32xf32>,
    %34 = vector.extract_strided_slice %29 {offsets = [0, 64], sizes = [16, 32], strides = [1, 1]} : vector<16x96xf32> to vector<16x32xf32>
    %c0_18 = arith.constant 0 : index
    %c0_19 = arith.constant 0 : index
    %35 = vector.load %arg8[%c0_18, %c0_19] : memref<16x32xf32, #tpu.memory_space<vmem>>, vector<16x32xf32>
    tpu.vector_store %arg8[%c0_18, %c0_19], %34 {strides = array<i32>} : memref<16x32xf32, #tpu.memory_space<vmem>>, vector<16x32xf32>,
    return
  }
  func.func @transform_0(%arg0: i32) -> (i32, i32) {
    %c0_i32 = arith.constant 0 : i32
    %c0_i32_0 = arith.constant 0 : i32
    return %arg0, %c0_i32 : i32, i32
  }
  func.func @transform_1(%arg0: i32) -> (i32, i32) {
    %c0_i32 = arith.constant 0 : i32
    %c0_i32_0 = arith.constant 0 : i32
    %c0_i32_1 = arith.constant 0 : i32
    return %c0_i32, %c0_i32_0 : i32, i32
  }
  func.func @transform_2(%arg0: i32) -> (i32, i32) {
    %c0_i32 = arith.constant 0 : i32
    %c0_i32_0 = arith.constant 0 : i32
    %c0_i32_1 = arith.constant 0 : i32
    return %c0_i32, %c0_i32_0 : i32, i32
  }
  func.func @transform_3(%arg0: i32) -> (i32, i32) {
    %c0_i32 = arith.constant 0 : i32
    %c0_i32_0 = arith.constant 0 : i32
    %c0_i32_1 = arith.constant 0 : i32
    return %c0_i32, %c0_i32_0 : i32, i32
  }
  func.func @transform_4(%arg0: i32) -> (i32, i32) {
    %c0_i32 = arith.constant 0 : i32
    %c0_i32_0 = arith.constant 0 : i32
    %c0_i32_1 = arith.constant 0 : i32
    return %c0_i32, %c0_i32_0 : i32, i32
  }
  func.func @transform_5(%arg0: i32) -> (i32, i32) {
    %c0_i32 = arith.constant 0 : i32
    %c0_i32_0 = arith.constant 0 : i32
    return %arg0, %c0_i32 : i32, i32
  }
  func.func @transform_6(%arg0: i32) -> (i32, i32) {
    %c0_i32 = arith.constant 0 : i32
    %c0_i32_0 = arith.constant 0 : i32
    return %arg0, %c0_i32 : i32, i32
  }
  func.func @transform_7(%arg0: i32) -> (i32, i32) {
    %c0_i32 = arith.constant 0 : i32
    %c0_i32_0 = arith.constant 0 : i32
    return %arg0, %c0_i32 : i32, i32
  }
}

</mosaic_0001>

<llo_original>
// kernel: tpu_custom_call.1
$region0: #{tpu_custom_call.1}
  #allocation0 [shape = 'u32[]', space=smem, size = 0x4, offset = 0x4, fixed_abs, tag = 'smem constant byte address 0x4 - core index']
  #allocation1 [shape = 'u32[144,128]{1,0:T(1,128)}', space=vmem, size = 0x12000, scoped, tag = 'internal scratch']
  %s0 = inlined_call_operand.hbm [shape: f32[16,32], index: 0, kind: input, shape index: {}]
  %s1 = inlined_call_operand.vmem [shape: f32[1,32], index: 1, kind: input, shape index: {}]
  %s2 = inlined_call_operand.vmem [shape: f32[1,32], index: 2, kind: input, shape index: {}]
  %s3 = inlined_call_operand.hbm [shape: f32[32,96], index: 3, kind: input, shape index: {}]
  %s4 = inlined_call_operand.vmem [shape: f32[1,96], index: 4, kind: input, shape index: {}]
  %s5 = inlined_call_operand.hbm [shape: f32[16,32], index: 5, kind: output, shape index: {0}]
  %s6 = inlined_call_operand.hbm [shape: f32[16,32], index: 6, kind: output, shape index: {1}]
  %s7 = inlined_call_operand.hbm [shape: f32[16,32], index: 7, kind: output, shape index: {2}]
  %8 = xla_tuple %s5, %s6, %s7
  %s9 = sld [smem:[#allocation0]]
  $region54: #{tpu_custom_call.1} parent=0
    _
  %s11 = ssub.s32 1, %s9
  %s12 = scalar_select 0, %s11, %s9
  $region1: #{tpu_custom_call.1} parent=0
    #allocation2 [shape = 'u8[8192]{0}', space=vmem, size = 0x2000, scoped, tag = 'input window, operand 0, single buffered']
    #allocation3 [shape = 's32[1]{0}', space=sflag, size = 0x4, scoped, tag = 'scoped memory for tpu_custom_call.1']
    #allocation4 [shape = 's32[1]{0}', space=sflag, size = 0x4, scoped, tag = 'scoped memory for tpu_custom_call.1']
    #allocation5 [shape = 'u8[16384]{0}', space=vmem, size = 0x4000, scoped, tag = 'input window, operand 3, single buffered']
    #allocation6 [shape = 's32[1]{0}', space=sflag, size = 0x4, scoped, tag = 'scoped memory for tpu_custom_call.1']
    #allocation7 [shape = 'u8[8192]{0}', space=vmem, size = 0x2000, scoped, tag = 'output window, operand 0, single buffered']
    #allocation8 [shape = 'u8[8192]{0}', space=vmem, size = 0x2000, scoped, tag = 'output window, operand 1, single buffered']
    #allocation9 [shape = 's32[1]{0}', space=sflag, size = 0x4, scoped, tag = 'scoped memory for tpu_custom_call.1']
    #allocation10 [shape = 'u8[8192]{0}', space=vmem, size = 0x2000, scoped, tag = 'output window, operand 2, single buffered']
    %13 = vsyncpa [#allocation3], 0
    %14 = vsyncpa [#allocation6], 0
    %15 = vsyncpa [#allocation4], 0
    %16 = vsyncpa [#allocation9], 0
    // Predicated region
    $region2: #{tpu_custom_call.1} parent=1 // pred_check
      _
    $region3: #{tpu_custom_call.1} parent=1 // pred_check_branch
      %18 = sbr.rel (0) target = $region5
    $region4: #{tpu_custom_call.1} parent=1 // pred_region
      %s20 = ssub.s32 256, 256
      %21 = vsyncadd [#allocation3], %s20
      %s22 = sshll.u32 [#allocation2], 4
      %s23 = int_to_ptr.vmem [resolvable:$true] %s22
      %28 = dma.hbm_to_vmem [thread:$0]  %s0, 256, %s23, [#allocation3], 128, 128, 8
    $region5: #{tpu_custom_call.1} parent=1 // pred_fallthru
      _
    // Predicated region
    $region6: #{tpu_custom_call.1} parent=1 // pred_check
      _
    $region7: #{tpu_custom_call.1} parent=1 // pred_check_branch
      %30 = sbr.rel (0) target = $region9
    $region8: #{tpu_custom_call.1} parent=1 // pred_region
      _
    $region9: #{tpu_custom_call.1} parent=1 // pred_fallthru
      _
    // Predicated region
    $region10: #{tpu_custom_call.1} parent=1 // pred_check
      _
    $region11: #{tpu_custom_call.1} parent=1 // pred_check_branch
      %32 = sbr.rel (0) target = $region13
    $region12: #{tpu_custom_call.1} parent=1 // pred_region
      _
    $region13: #{tpu_custom_call.1} parent=1 // pred_fallthru
      _
    // Predicated region
    $region14: #{tpu_custom_call.1} parent=1 // pred_check
      _
    $region15: #{tpu_custom_call.1} parent=1 // pred_check_branch
      %34 = sbr.rel (0) target = $region17
    $region16: #{tpu_custom_call.1} parent=1 // pred_region
      %s36 = ssub.s32 512, 512
      %37 = vsyncadd [#allocation6], %s36
      %s38 = sshll.u32 [#allocation5], 4
      %s39 = int_to_ptr.vmem [resolvable:$true] %s38
      %44 = dma.hbm_to_vmem [thread:$0]  %s3, 512, %s39, [#allocation6], 128, 128, 8
    $region17: #{tpu_custom_call.1} parent=1 // pred_fallthru
      _
    // Predicated region
    $region18: #{tpu_custom_call.1} parent=1 // pred_check
      _
    $region19: #{tpu_custom_call.1} parent=1 // pred_check_branch
      %46 = sbr.rel (0) target = $region21
    $region20: #{tpu_custom_call.1} parent=1 // pred_region
      _
    $region21: #{tpu_custom_call.1} parent=1 // pred_fallthru
      _
    // Predicated region
    $region22: #{tpu_custom_call.1} parent=1 // pred_check
      _
    $region23: #{tpu_custom_call.1} parent=1 // pred_check_branch
      %48 = sbr.rel (0) target = $region25
    $region24: #{tpu_custom_call.1} parent=1 // pred_region
      %49 = dma.done [#allocation3], 256
    $region25: #{tpu_custom_call.1} parent=1 // pred_fallthru
      _
    // Predicated region
    $region26: #{tpu_custom_call.1} parent=1 // pred_check
      _
    $region27: #{tpu_custom_call.1} parent=1 // pred_check_branch
      %51 = sbr.rel (0) target = $region29
    $region28: #{tpu_custom_call.1} parent=1 // pred_region
      %52 = dma.done [#allocation6], 512
    $region29: #{tpu_custom_call.1} parent=1 // pred_fallthru
      _
    %v53 = vld [vmem:[#allocation2] sm:$0xff]
    %v54 = vld [vmem:[#allocation2 + $0x8] sm:$0xff]
    %vm55 = vcmask 261120
    %v56 = vsel %vm55, %v53, 0.0
    %57 = vadd.xlane.f32.xlu0 %v56
    %v58 = vpop.xlane.xlu0 %57
    %v59 = vsel %vm55, %v54, 0.0
    %60 = vadd.xlane.f32.xlu0 %v59
    %v61 = vpop.xlane.xlu0 %60
    %v62 = vrcp.pop 32.0
    %v63 = vmul.f32 %v58, %v62
    %v64 = vmul.f32 %v61, %v62
    %v65 = vsub.f32 %v53, %v63
    %v66 = vsub.f32 %v54, %v64
    %v67 = vmul.f32 %v65, %v65
    %v68 = vmul.f32 %v66, %v66
    %v69 = vsel %vm55, %v67, 0.0
    %70 = vadd.xlane.f32.xlu0 %v69
    %v71 = vpop.xlane.xlu0 %70
    %v72 = vsel %vm55, %v68, 0.0
    %73 = vadd.xlane.f32.xlu0 %v72
    %v74 = vpop.xlane.xlu0 %73
    %v75 = vmul.f32 %v71, %v62
    %v76 = vmul.f32 %v74, %v62
    %v77 = vadd.f32 %v75, 1e-05
    %v78 = vadd.f32 %v76, 1e-05
    %v79 = vrsqrt.pop %v77
    %v80 = vrsqrt.pop %v78
    %v81 = vmul.f32 %v65, %v79
    %v82 = vmul.f32 %v66, %v80
    %v83 = vld [vmem:[%s1] sm:$0x1]
    %v85 = vlaneseq
    %v86 = vshrl.u32 %v85, 7
    %v87 = vsub.s32 0, %v86
    %v88 = vrot.slane %v83, %v87
    %v90 = vmul.f32 %v81, %v88
    %v91 = vmul.f32 %v82, %v88
    %v92 = vld [vmem:[%s2] sm:$0x1]
    %v94 = vlaneseq
    %v95 = vshrl.u32 %v94, 7
    %v96 = vsub.s32 0, %v95
    %v97 = vrot.slane %v92, %v96
    %v99 = vadd.f32 %v90, %v97
    %v100 = vadd.f32 %v91, %v97
    %v101 = vld [vmem:[#allocation5] sm:$0xff]
    %v102 = vld [vmem:[#allocation5 + $0x8] sm:$0xff]
    %v103 = vld [vmem:[#allocation5 + $0x10] sm:$0xff]
    %v104 = vld [vmem:[#allocation5 + $0x18] sm:$0xff]
    %v105 = vld [vmem:[%s4] sm:$0x1]
    %v107 = vlaneseq
    %v108 = vshrl.u32 %v107, 7
    %v109 = vsub.s32 0, %v108
    %v110 = vrot.slane %v105, %v109
    %v113 = vsel %vm55, %v99, 0
    %v116 = vsel %vm55, %v100, 0
    %118 = vmatprep.subr.mxu0 0.0
    %119 = vmatpush1.msra.mxu0 %v101
    %120 = vmatprep.subr.mxu0 0.0
    %121 = vmatpush1.msra.mxu0 %v102
    %122 = vmatprep.subr.mxu0 0.0
    %123 = vmatpush1.msra.mxu0 %v103
    %124 = vmatprep.subr.mxu0 0.0
    %125 = vmatpush1.msra.mxu0 %v104
    %126 = vmatprep.subr.mxu0 0.0
    %127 = vmatpush1.msra.mxu0 0.0
    %128 = vmatprep.subr.mxu0 0.0
    %129 = vmatpush1.msra.mxu0 0.0
    %130 = vmatprep.subr.mxu0 0.0
    %131 = vmatpush1.msra.mxu0 0.0
    %132 = vmatprep.subr.mxu0 0.0
    %133 = vmatpush1.msra.mxu0 0.0
    %134 = vmatprep.subr.mxu0 0.0
    %135 = vmatpush1.msra.mxu0 0.0
    %136 = vmatprep.subr.mxu0 0.0
    %137 = vmatpush1.msra.mxu0 0.0
    %138 = vmatprep.subr.mxu0 0.0
    %139 = vmatpush1.msra.mxu0 0.0
    %140 = vmatprep.subr.mxu0 0.0
    %141 = vmatpush1.msra.mxu0 0.0
    %142 = vmatprep.subr.mxu0 0.0
    %143 = vmatpush1.msra.mxu0 0.0
    %144 = vmatprep.subr.mxu0 0.0
    %145 = vmatpush1.msra.mxu0 0.0
    %146 = vmatprep.subr.mxu0 0.0
    %147 = vmatpush1.msra.mxu0 0.0
    %148 = vmatprep.subr.mxu0 0.0
    %149 = vmatpush1.msra.mxu0 0.0
    %150 = vmatprep.subr.mxu0 0.0
    %151 = vmatpush1.msra.mxu0 0.0
    %152 = vmatprep.subr.mxu0 0.0
    %153 = vmatpush1.msra.mxu0 0.0
    %154 = vmatprep.subr.mxu0 0.0
    %155 = vmatpush1.msra.mxu0 0.0
    %156 = vmatprep.subr.mxu0 0.0
    %157 = vmatpush1.msra.mxu0 0.0
    %158 = vmatprep.subr.mxu0 0.0
    %159 = vmatpush1.msra.mxu0 0.0
    %160 = vmatprep.subr.mxu0 0.0
    %161 = vmatpush1.msra.mxu0 0.0
    %162 = vmatprep.subr.mxu0 0.0
    %163 = vmatpush1.msra.mxu0 0.0
    %164 = vmatprep.subr.mxu0 0.0
    %165 = vmatpush1.msra.mxu0 0.0
    %166 = vmatprep.subr.mxu0 0.0
    %167 = vmatpush1.msra.mxu0 0.0
    %168 = vmatprep.subr.mxu0 0.0
    %169 = vmatpush1.msra.mxu0 0.0
    %170 = vmatprep.subr.mxu0 0.0
    %171 = vmatpush1.msra.mxu0 0.0
    %172 = vmatprep.subr.mxu0 0.0
    %173 = vmatpush1.msra.mxu0 0.0
    %174 = vmatprep.subr.mxu0 0.0
    %175 = vmatpush1.msra.mxu0 0.0
    %176 = vmatprep.subr.mxu0 0.0
    %177 = vmatpush1.msra.mxu0 0.0
    %178 = vmatprep.subr.mxu0 0.0
    %179 = vmatpush1.msra.mxu0 0.0
    %180 = vmatprep.subr.mxu0 0.0
    %181 = vmatpush1.msra.mxu0 0.0
    %182 = vmatprep.mubr.f32.mxu0 0.0
    %183 = vmatmul.mubr.f32.gmra.mrb[0].mxu0 %v113
    %v184 = vpop.f32.mrb[0].mxu0
    %v185 = vadd.f32 %v110, %v184
    %v186 = vpop.f32.mrb[0].mxu0
    %187 = vmatprep.mubr.f32.mxu0 0.0
    %188 = vmatmul.mubr.f32.gmra.mrb[0].mxu0 %v116
    %v189 = vpop.f32.mrb[0].mxu0
    %v190 = vadd.f32 %v110, %v189
    %v191 = vpop.f32.mrb[0].mxu0
    %192 = vdwg.mxu0
    %193 = vst.msk [vmem:[#allocation7] sm:$0xff] %vm55, %v185
    %194 = vst.msk [vmem:[#allocation7 + $0x8] sm:$0xff] %vm55, %v190
    %197 = vrot.lane.b32.xlu0 %v185, 96
    %v198 = vpop.permute.xlu0 %197
    %199 = vrot.lane.b32.xlu0 %v190, 96
    %v200 = vpop.permute.xlu0 %199
    %203 = vst.msk [vmem:[#allocation8] sm:$0xff] %vm55, %v198
    %204 = vst.msk [vmem:[#allocation8 + $0x8] sm:$0xff] %vm55, %v200
    %205 = vrot.lane.b32.xlu0 %v185, 64
    %v206 = vpop.permute.xlu0 %205
    %207 = vrot.lane.b32.xlu0 %v190, 64
    %v208 = vpop.permute.xlu0 %207
    %211 = vst.msk [vmem:[#allocation10] sm:$0xff] %vm55, %v206
    %212 = vst.msk [vmem:[#allocation10 + $0x8] sm:$0xff] %vm55, %v208
    // Predicated region
    $region30: #{tpu_custom_call.1} parent=1 // pred_check
      _
    $region31: #{tpu_custom_call.1} parent=1 // pred_check_branch
      %214 = sbr.rel (0) target = $region33
    $region32: #{tpu_custom_call.1} parent=1 // pred_region
      %s216 = ssub.s32 256, 256
      %217 = vsyncadd [#allocation4], %s216
      %s218 = sshll.u32 [#allocation7], 4
      %s219 = int_to_ptr.vmem [resolvable:$true] %s218
      %224 = dma.vmem_to_hbm [thread:$0]  %s219, 256, %s5, [#allocation4], 128, 128, 8
    $region33: #{tpu_custom_call.1} parent=1 // pred_fallthru
      _
    // Predicated region
    $region34: #{tpu_custom_call.1} parent=1 // pred_check
      _
    $region35: #{tpu_custom_call.1} parent=1 // pred_check_branch
      %226 = sbr.rel (0) target = $region37
    $region36: #{tpu_custom_call.1} parent=1 // pred_region
      %s228 = ssub.s32 256, 256
      %229 = vsyncadd [#allocation9], %s228
      %s230 = sshll.u32 [#allocation8], 4
      %s231 = int_to_ptr.vmem [resolvable:$true] %s230
      %236 = dma.vmem_to_hbm [thread:$0]  %s231, 256, %s6, [#allocation9], 128, 128, 8
    $region37: #{tpu_custom_call.1} parent=1 // pred_fallthru
      _
    // Predicated region
    $region38: #{tpu_custom_call.1} parent=1 // pred_check
      _
    $region39: #{tpu_custom_call.1} parent=1 // pred_check_branch
      %238 = sbr.rel (0) target = $region41
    $region40: #{tpu_custom_call.1} parent=1 // pred_region
      %s240 = ssub.s32 256, 256
      %241 = vsyncadd [#allocation9], %s240
      %s242 = sshll.u32 [#allocation10], 4
      %s243 = int_to_ptr.vmem [resolvable:$true] %s242
      %248 = dma.vmem_to_hbm [thread:$0]  %s243, 256, %s7, [#allocation9], 128, 128, 8
    $region41: #{tpu_custom_call.1} parent=1 // pred_fallthru
      _
    // Predicated region
    $region42: #{tpu_custom_call.1} parent=1 // pred_check
      _
    $region43: #{tpu_custom_call.1} parent=1 // pred_check_branch
      %250 = sbr.rel (0) target = $region45
    $region44: #{tpu_custom_call.1} parent=1 // pred_region
      %251 = dma.done [#allocation4], 256
    $region45: #{tpu_custom_call.1} parent=1 // pred_fallthru
      _
    // Predicated region
    $region46: #{tpu_custom_call.1} parent=1 // pred_check
      _
    $region47: #{tpu_custom_call.1} parent=1 // pred_check_branch
      %253 = sbr.rel (0) target = $region49
    $region48: #{tpu_custom_call.1} parent=1 // pred_region
      %254 = dma.done [#allocation9], 256
    $region49: #{tpu_custom_call.1} parent=1 // pred_fallthru
      _
    // Predicated region
    $region50: #{tpu_custom_call.1} parent=1 // pred_check
      _
    $region51: #{tpu_custom_call.1} parent=1 // pred_check_branch
      %256 = sbr.rel (0) target = $region53
    $region52: #{tpu_custom_call.1} parent=1 // pred_region
      %257 = dma.done [#allocation9], 256
    $region53: #{tpu_custom_call.1} parent=1 // pred_fallthru
      _
    %258 = vsyncpa [#allocation3], 1
    %259 = vsyncpa [#allocation6], 1
    %260 = vsyncpa [#allocation4], 1
    %261 = vsyncpa [#allocation9], 1

</llo_original>
